<compile_context>
chip_gen: v6e
topology: v6e:2x2x1
jax: 0.10.0
libtpu: 0.0.40
codegen_flags: <defaults>
</compile_context>

<pallas_src>
import jax
import jax.numpy as jnp
from jax.experimental import pallas as pl
from jax.experimental.pallas import tpu as pltpu

# Hyperparameters from AsymmetricLossOptimized.__init__ defaults.
GAMMA_NEG = 4      # integer exponents -> pow() becomes 2 multiplies
GAMMA_POS = 1
CLIP = 0.05
EPS = 1e-8


def _int_pow(v, e):
    """v**e for a static non-negative integer e via repeated squaring (VPU only)."""
    e = int(e)
    assert e >= 0
    if e == 0:
        return jnp.ones_like(v)
    result = None
    sq = v
    while e:
        if e & 1:
            result = sq if result is None else result * sq
        e >>= 1
        if e:
            sq = sq * sq
    return result


def _make_asl_kernel(batch, row_tile, n_classes, needs_mask, num_tiles):
    ngroups = row_tile // 8

    def fold(v):
        # (row_tile, C) -> (8, C): sublane split at an 8-row boundary keeps data
        # in place; the axis-0 sum is pure VPU adds (no cross-lane XLU reduce).
        return jnp.sum(v.reshape(ngroups, 8, n_classes), axis=0)

    def kernel(x_ref, y_ref, out_ref):
        x = x_ref[...].astype(jnp.float32)
        y = y_ref[...].astype(jnp.float32)

        # Binary targets => the two log terms and the pow() exponent collapse to
        # selects on the "selected probability":
        #   y==1 -> p = sigmoid(x),                 w = (1-p)**gamma_pos
        #   y==0 -> p = min(1-sigmoid(x)+clip, 1),  w = (1-p)**gamma_neg
        is_pos = y > 0.0
        xs_pos = 0.5 * (jnp.tanh(0.5 * x) + 1.0)          # sigmoid, 1 EUP push
        xs_neg = jnp.minimum(1.0 - xs_pos + CLIP, 1.0)    # clip > 0 branch
        p_sel = jnp.where(is_pos, xs_pos, xs_neg)
        log_p = jnp.log(jnp.maximum(p_sel, EPS))          # single fused log (EUP)

        base = 1.0 - p_sel    # == 1 - xs_pos*y - xs_neg*(1-y) for binary y
        asym_w = jnp.where(is_pos,
                           _int_pow(base, GAMMA_POS),
                           _int_pow(base, GAMMA_NEG))
        loss = log_p * asym_w

        if not needs_mask:
            out_ref[...] = fold(loss)
        else:
            # Only the last tile over-covers the batch; mask only there so the
            # iota/compare/select is not paid on every grid step.
            last = num_tiles - 1

            @pl.when(pl.program_id(0) != last)
            def _():
                out_ref[...] = fold(loss)

            @pl.when(pl.program_id(0) == last)
            def _():
                row = (last * row_tile
                       + jax.lax.broadcasted_iota(jnp.int32, (row_tile, 1), 0))
                out_ref[...] = fold(jnp.where(row < batch, loss, 0.0))

    return kernel


def _sublane_granule(dtype):
    """Native sublane tiling granule: 8 (32-bit), 16 (16-bit), 32 (8-bit)."""
    bits = jnp.dtype(dtype).itemsize * 8
    return max(8, 256 // bits)


def _pick_row_tile(batch, n_classes, granule, *, target_block_bytes=2 << 20):
    """Largest row tile (multiple of the sublane granule, <= batch) with roughly
    <= 2 MiB of f32 working set per block.  The VMEM footprint uses the
    lane-padded class count so small-C inputs don't blow up VMEM.  ~2 MiB keeps
    2 inputs x 2 pipeline buffers + elementwise temporaries comfortable even on
    v7x's 64 MiB VMEM, while reaching the 85%+ HBM-roofline regime on v5e/v6e."""
    c_pad = -(-n_classes // 128) * 128
    rows = max(granule, target_block_bytes // (c_pad * 4))
    rows = (rows // granule) * granule
    rows = min(rows, (batch // granule) * granule)   # never exceed the batch
    return max(granule, rows)


def asymmetric_loss(x, y, *, row_tile=None, target_block_bytes=2 << 20):
    """x: (B, C) logits, y: (B, C) multi-hot {0,1} targets. Returns scalar loss.

    Accepts f32/bf16 logits and f32/bf16/int8 targets; math is done in f32."""
    assert x.ndim == 2 and x.shape == y.shape
    B, C = x.shape
    granule = max(_sublane_granule(x.dtype), _sublane_granule(y.dtype))

    if B < granule:
        # Tiny batch: pad a handful of rows with inert values that contribute
        # exactly 0 (sigmoid(-30)->0, y=0 -> xs_neg clamps to 1, log(1)=0, base=0).
        pad = granule - B
        x = jnp.pad(x, ((0, pad), (0, 0)), constant_values=-30.0)
        y = jnp.pad(y, ((0, pad), (0, 0)), constant_values=0)
        B = granule

    if row_tile is None:
        row_tile = _pick_row_tile(B, C, granule,
                                  target_block_bytes=target_block_bytes)
    row_tile = max(granule, (row_tile // granule) * granule)

    num_tiles = -(-B // row_tile)                 # ceil-div, static Python int
    needs_mask = (B % row_tile) != 0              # last tile over-covers the batch

    kernel = _make_asl_kernel(B, row_tile, C, needs_mask, num_tiles)

    # Raise the scoped-VMEM limit so the 2 MiB blocks (2 inputs x 2 pipeline
    # buffers + elementwise temporaries) always fit; capped at 48 MiB so it stays
    # below v7x's 64 MiB physical VMEM.
    c_pad = -(-C // 128) * 128
    block_vmem_bytes = row_tile * c_pad * 4
    vmem_limit = int(min(48 << 20, max(16 << 20, 16 * block_vmem_bytes)))

    cost = pl.CostEstimate(
        flops=14 * B * C,
        transcendentals=2 * B * C,
        bytes_accessed=(x.size * x.dtype.itemsize + y.size * y.dtype.itemsize
                        + num_tiles * 8 * C * 4),
    )

    partials = pl.pallas_call(
        kernel,
        out_shape=jax.ShapeDtypeStruct((num_tiles * 8, C), jnp.float32),
        grid_spec=pltpu.PrefetchScalarGridSpec(
            num_scalar_prefetch=0,
            grid=(num_tiles,),
            in_specs=[
                pl.BlockSpec((row_tile, C), lambda i: (i, 0)),
                pl.BlockSpec((row_tile, C), lambda i: (i, 0)),
            ],
            out_specs=pl.BlockSpec((8, C), lambda i: (i, 0)),
        ),
        compiler_params=pltpu.CompilerParams(
            dimension_semantics=("parallel",),
            vmem_limit_bytes=vmem_limit),
        cost_estimate=cost,
    )(x, y)

    # Tiny epilogue reduce ((num_tiles*8, C) -> scalar) and negate, in f32.
    return -jnp.sum(partials)


def _reference(x, y):
    # Pure-JAX reference mirroring the PyTorch forward exactly.
    x = x.astype(jnp.float32)
    y = y.astype(jnp.float32)
    anti = 1.0 - y
    xs_pos = jax.nn.sigmoid(x)
    xs_neg = jnp.minimum(1.0 - xs_pos + CLIP, 1.0)
    loss = (y * jnp.log(jnp.maximum(xs_pos, EPS))
            + anti * jnp.log(jnp.maximum(xs_neg, EPS)))
    w = jnp.power(1.0 - xs_pos * y - xs_neg * anti,
                  GAMMA_POS * y + GAMMA_NEG * anti)
    return -jnp.sum(loss * w)


if __name__ == "__main__":
    # Case 1: tile-aligned f32 batch (16 examples, 128 classes).
    kx, ky = jax.random.split(jax.random.PRNGKey(0))
    B, C = 16, 128
    x = jax.random.normal(kx, (B, C), dtype=jnp.float32)
    y = (jax.random.uniform(ky, (B, C)) < 0.3).astype(jnp.float32)
    loss = jax.block_until_ready(asymmetric_loss(x, y))
    ref = jax.block_until_ready(_reference(x, y))
    assert jnp.allclose(loss, ref, rtol=1e-4, atol=1e-4), (loss, ref)

    # Case 2: ragged batch / non-128 class count (over-cover + last-tile mask,
    # no jnp.pad copy of the inputs).
    kx2, ky2 = jax.random.split(jax.random.PRNGKey(1))
    B2, C2 = 10, 96
    x2 = jax.random.normal(kx2, (B2, C2), dtype=jnp.float32)
    y2 = (jax.random.uniform(ky2, (B2, C2)) < 0.3).astype(jnp.float32)
    loss2 = jax.block_until_ready(asymmetric_loss(x2, y2))
    ref2 = jax.block_until_ready(_reference(x2, y2))
    assert jnp.allclose(loss2, ref2, rtol=1e-4, atol=1e-4), (loss2, ref2)

    # Case 3: bf16 logits + int8 targets (halved HBM bytes; in-kernel f32 upcast).
    kx3, ky3 = jax.random.split(jax.random.PRNGKey(2))
    B3, C3 = 32, 128
    x3 = jax.random.normal(kx3, (B3, C3), dtype=jnp.float32).astype(jnp.bfloat16)
    y3 = (jax.random.uniform(ky3, (B3, C3)) < 0.3).astype(jnp.int8)
    loss3 = jax.block_until_ready(asymmetric_loss(x3, y3))
    ref3 = jax.block_until_ready(
        _reference(x3.astype(jnp.float32), y3.astype(jnp.float32)))
    assert jnp.allclose(loss3, ref3, rtol=2e-3, atol=1e-3), (loss3, ref3)

    # Case 4: batch smaller than a sublane granule (tiny inert-value pad path).
    kx4, ky4 = jax.random.split(jax.random.PRNGKey(3))
    B4, C4 = 4, 128
    x4 = jax.random.normal(kx4, (B4, C4), dtype=jnp.float32)
    y4 = (jax.random.uniform(ky4, (B4, C4)) < 0.3).astype(jnp.float32)
    loss4 = jax.block_until_ready(asymmetric_loss(x4, y4))
    ref4 = jax.block_until_ready(_reference(x4, y4))
    assert jnp.allclose(loss4, ref4, rtol=1e-4, atol=1e-4), (loss4, ref4)

    print("KERNEL_OK")
</pallas_src>

<mosaic_0001>
module attributes {stable_mosaic.version = 11 : i64} {
  func.func @kernel(%arg0: i32, %arg1: memref<16x128xf32, #tpu.memory_space<vmem>>, %arg2: memref<16x128xf32, #tpu.memory_space<vmem>>, %arg3: memref<8x128xf32, #tpu.memory_space<vmem>>) attributes {dimension_semantics = [#tpu.dimension_semantics<parallel>], iteration_bounds = array<i64: 1>, scalar_prefetch = 0 : i64, scratch_operands = 0 : i64, tpu.core_type = #tpu.core_type<tc>, window_params = [{transform_indices = @transform_0, window_bounds = array<i64: 16, 128>}, {transform_indices = @transform_1, window_bounds = array<i64: 16, 128>}, {transform_indices = @transform_2, window_bounds = array<i64: 8, 128>}]} {
    %c0 = arith.constant 0 : index
    %c0_0 = arith.constant 0 : index
    %0 = vector.load %arg1[%c0, %c0_0] : memref<16x128xf32, #tpu.memory_space<vmem>>, vector<16x128xf32>
    %c0_1 = arith.constant 0 : index
    %c0_2 = arith.constant 0 : index
    %1 = vector.load %arg2[%c0_1, %c0_2] : memref<16x128xf32, #tpu.memory_space<vmem>>, vector<16x128xf32>
    %cst = arith.constant 0.000000e+00 : f32
    %2 = vector.broadcast %cst : f32 to vector<16x128xf32>
    %3 = arith.cmpf ogt, %1, %2 : vector<16x128xf32>
    %cst_3 = arith.constant 5.000000e-01 : f32
    %4 = vector.broadcast %cst_3 : f32 to vector<16x128xf32>
    %5 = arith.mulf %4, %0 : vector<16x128xf32>
    %6 = math.tanh %5 : vector<16x128xf32>
    %cst_4 = arith.constant 1.000000e+00 : f32
    %7 = vector.broadcast %cst_4 : f32 to vector<16x128xf32>
    %8 = arith.addf %6, %7 : vector<16x128xf32>
    %cst_5 = arith.constant 5.000000e-01 : f32
    %9 = vector.broadcast %cst_5 : f32 to vector<16x128xf32>
    %10 = arith.mulf %9, %8 : vector<16x128xf32>
    %cst_6 = arith.constant 1.000000e+00 : f32
    %11 = vector.broadcast %cst_6 : f32 to vector<16x128xf32>
    %12 = arith.subf %11, %10 : vector<16x128xf32>
    %cst_7 = arith.constant 5.000000e-02 : f32
    %13 = vector.broadcast %cst_7 : f32 to vector<16x128xf32>
    %14 = arith.addf %12, %13 : vector<16x128xf32>
    %cst_8 = arith.constant 1.000000e+00 : f32
    %15 = vector.broadcast %cst_8 : f32 to vector<16x128xf32>
    %16 = arith.minimumf %14, %15 : vector<16x128xf32>
    %17 = arith.select %3, %10, %16 : vector<16x128xi1>, vector<16x128xf32>
    %cst_9 = arith.constant 9.99999993E-9 : f32
    %18 = vector.broadcast %cst_9 : f32 to vector<16x128xf32>
    %19 = arith.maximumf %17, %18 : vector<16x128xf32>
    %20 = math.log %19 : vector<16x128xf32>
    %cst_10 = arith.constant 1.000000e+00 : f32
    %21 = vector.broadcast %cst_10 : f32 to vector<16x128xf32>
    %22 = arith.subf %21, %17 : vector<16x128xf32>
    %23 = arith.mulf %22, %22 : vector<16x128xf32>
    %24 = arith.mulf %23, %23 : vector<16x128xf32>
    %25 = arith.select %3, %22, %24 : vector<16x128xi1>, vector<16x128xf32>
    %26 = arith.mulf %20, %25 : vector<16x128xf32>
    %27 = vector.shape_cast %26 : vector<16x128xf32> to vector<2x8x128xf32>
    %cst_11 = arith.constant dense<0.000000e+00> : vector<8x128xf32>
    %28 = vector.multi_reduction <add>, %27, %cst_11 [0] : vector<2x8x128xf32> to vector<8x128xf32>
    %c0_12 = arith.constant 0 : index
    %c0_13 = arith.constant 0 : index
    %29 = vector.load %arg3[%c0_12, %c0_13] : memref<8x128xf32, #tpu.memory_space<vmem>>, vector<8x128xf32>
    tpu.vector_store %arg3[%c0_12, %c0_13], %28 {strides = array<i32>} : memref<8x128xf32, #tpu.memory_space<vmem>>, vector<8x128xf32>,
    return
  }
  func.func @transform_0(%arg0: i32) -> (i32, i32) {
    %c0_i32 = arith.constant 0 : i32
    %c0_i32_0 = arith.constant 0 : i32
    return %arg0, %c0_i32 : i32, i32
  }
  func.func @transform_1(%arg0: i32) -> (i32, i32) {
    %c0_i32 = arith.constant 0 : i32
    %c0_i32_0 = arith.constant 0 : i32
    return %arg0, %c0_i32 : i32, i32
  }
  func.func @transform_2(%arg0: i32) -> (i32, i32) {
    %c0_i32 = arith.constant 0 : i32
    %c0_i32_0 = arith.constant 0 : i32
    return %arg0, %c0_i32 : i32, i32
  }
}

</mosaic_0001>

<llo_original>
// kernel: tpu_custom_call.1
$region0: #{tpu_custom_call.1}
  #allocation0 [shape = 'u32[]', space=smem, size = 0x4, offset = 0x4, fixed_abs, tag = 'smem constant byte address 0x4 - core index']
  #allocation1 [shape = 'u32[144,128]{1,0:T(1,128)}', space=vmem, size = 0x12000, scoped, tag = 'internal scratch']
  %s0 = inlined_call_operand.hbm [shape: f32[16,128], index: 0, kind: input, shape index: {}]
  %s1 = inlined_call_operand.hbm [shape: f32[16,128], index: 1, kind: input, shape index: {}]
  %s2 = inlined_call_operand.hbm [shape: f32[8,128], index: 2, kind: output, shape index: {}]
  %s3 = sld [smem:[#allocation0]]
  $region26: #{tpu_custom_call.1} parent=0
    _
  %s5 = ssub.s32 1, %s3
  %s6 = scalar_select 0, %s5, %s3
  $region1: #{tpu_custom_call.1} parent=0
    #allocation2 [shape = 'u8[8192]{0}', space=vmem, size = 0x2000, scoped, tag = 'input window, operand 0, single buffered']
    #allocation3 [shape = 's32[1]{0}', space=sflag, size = 0x4, scoped, tag = 'scoped memory for tpu_custom_call.1']
    #allocation4 [shape = 's32[1]{0}', space=sflag, size = 0x4, scoped, tag = 'scoped memory for tpu_custom_call.1']
    #allocation5 [shape = 'u8[8192]{0}', space=vmem, size = 0x2000, scoped, tag = 'input window, operand 1, single buffered']
    #allocation6 [shape = 's32[1]{0}', space=sflag, size = 0x4, scoped, tag = 'scoped memory for tpu_custom_call.1']
    #allocation7 [shape = 'u8[4096]{0}', space=vmem, size = 0x1000, scoped, tag = 'output window, operand 0, single buffered']
    %7 = vsyncpa [#allocation3], 0
    %8 = vsyncpa [#allocation6], 0
    %9 = vsyncpa [#allocation4], 0
    // Predicated region
    $region2: #{tpu_custom_call.1} parent=1 // pred_check
      _
    $region3: #{tpu_custom_call.1} parent=1 // pred_check_branch
      %11 = sbr.rel (0) target = $region5
    $region4: #{tpu_custom_call.1} parent=1 // pred_region
      %s13 = ssub.s32 256, 256
      %14 = vsyncadd [#allocation3], %s13
      %s15 = sshll.u32 [#allocation2], 4
      %s16 = int_to_ptr.vmem [resolvable:$true] %s15
      %21 = dma.hbm_to_vmem [thread:$0]  %s0, 256, %s16, [#allocation3], 128, 128, 8
    $region5: #{tpu_custom_call.1} parent=1 // pred_fallthru
      _
    // Predicated region
    $region6: #{tpu_custom_call.1} parent=1 // pred_check
      _
    $region7: #{tpu_custom_call.1} parent=1 // pred_check_branch
      %23 = sbr.rel (0) target = $region9
    $region8: #{tpu_custom_call.1} parent=1 // pred_region
      %s25 = ssub.s32 256, 256
      %26 = vsyncadd [#allocation6], %s25
      %s27 = sshll.u32 [#allocation5], 4
      %s28 = int_to_ptr.vmem [resolvable:$true] %s27
      %33 = dma.hbm_to_vmem [thread:$0]  %s1, 256, %s28, [#allocation6], 128, 128, 8
    $region9: #{tpu_custom_call.1} parent=1 // pred_fallthru
      _
    // Predicated region
    $region10: #{tpu_custom_call.1} parent=1 // pred_check
      _
    $region11: #{tpu_custom_call.1} parent=1 // pred_check_branch
      %35 = sbr.rel (0) target = $region13
    $region12: #{tpu_custom_call.1} parent=1 // pred_region
      %36 = dma.done [#allocation3], 256
    $region13: #{tpu_custom_call.1} parent=1 // pred_fallthru
      _
    // Predicated region
    $region14: #{tpu_custom_call.1} parent=1 // pred_check
      _
    $region15: #{tpu_custom_call.1} parent=1 // pred_check_branch
      %38 = sbr.rel (0) target = $region17
    $region16: #{tpu_custom_call.1} parent=1 // pred_region
      %39 = dma.done [#allocation6], 256
    $region17: #{tpu_custom_call.1} parent=1 // pred_fallthru
      _
    %v40 = vld [vmem:[#allocation2] sm:$0xff]
    %v41 = vld [vmem:[#allocation2 + $0x8] sm:$0xff]
    %v42 = vld [vmem:[#allocation5] sm:$0xff]
    %v43 = vld [vmem:[#allocation5 + $0x8] sm:$0xff]
    %vm44 = vcmp.gt.f32.partialorder %v42, 0.0
    %vm45 = vcmp.gt.f32.partialorder %v43, 0.0
    %v46 = vmul.f32 %v40, 0.5
    %v47 = vmul.f32 %v41, 0.5
    %v48 = vtanh.pop %v46
    %v49 = vtanh.pop %v47
    %v50 = vadd.f32 %v48, 1.0
    %v51 = vadd.f32 %v49, 1.0
    %v52 = vmul.f32 %v50, 0.5
    %v53 = vmul.f32 %v51, 0.5
    %v54 = vsub.f32 1.0, %v52
    %v55 = vsub.f32 1.0, %v53
    %v56 = vadd.f32 %v54, 0.05
    %v57 = vadd.f32 %v55, 0.05
    %v58 = vmin.f32 %v56, 1.0
    %v59 = vmin.f32 %v57, 1.0
    %v60 = vsel %vm44, %v52, %v58
    %v61 = vsel %vm45, %v53, %v59
    %v62 = vmax.f32 %v60, 1e-08
    %v63 = vmax.f32 %v61, 1e-08
    %v64 = vlog2.pop %v62
    %v65 = vmul.f32 %v64, 0.6931472
    %v66 = vlog2.pop %v63
    %v67 = vmul.f32 %v66, 0.6931472
    %v68 = vsub.f32 1.0, %v60
    %v69 = vsub.f32 1.0, %v61
    %v70 = vmul.f32 %v68, %v68
    %v71 = vmul.f32 %v69, %v69
    %v72 = vmul.f32 %v70, %v70
    %v73 = vmul.f32 %v71, %v71
    %v74 = vsel %vm44, %v68, %v72
    %v75 = vsel %vm45, %v69, %v73
    %v76 = vmul.f32 %v65, %v74
    %v77 = vmul.f32 %v67, %v75
    %v78 = vadd.f32 %v76, %v77
    %79 = vst [vmem:[#allocation7] sm:$0xff] %v78
    // Predicated region
    $region18: #{tpu_custom_call.1} parent=1 // pred_check
      _
    $region19: #{tpu_custom_call.1} parent=1 // pred_check_branch
      %81 = sbr.rel (0) target = $region21
    $region20: #{tpu_custom_call.1} parent=1 // pred_region
      %s83 = ssub.s32 128, 128
      %84 = vsyncadd [#allocation4], %s83
      %s86 = sshll.u32 [#allocation7], 4
      %s87 = int_to_ptr.vmem [resolvable:$true] %s86
      %89 = dma.vmem_to_hbm [thread:$0]  %s87, 128, %s2, [#allocation4]
    $region21: #{tpu_custom_call.1} parent=1 // pred_fallthru
      _
    // Predicated region
    $region22: #{tpu_custom_call.1} parent=1 // pred_check
      _
    $region23: #{tpu_custom_call.1} parent=1 // pred_check_branch
      %91 = sbr.rel (0) target = $region25
    $region24: #{tpu_custom_call.1} parent=1 // pred_region
      %92 = dma.done [#allocation4], 128
    $region25: #{tpu_custom_call.1} parent=1 // pred_fallthru
      _
    %93 = vsyncpa [#allocation3], 1
    %94 = vsyncpa [#allocation6], 1
    %95 = vsyncpa [#allocation4], 1

</llo_original>
